<compile_context>
chip_gen: v5e
topology: v5e:2x2
jax: 0.10.0
libtpu: 0.0.40
codegen_flags: <defaults>
</compile_context>

<pallas_src>
import jax
import jax.numpy as jnp
from jax.experimental import pallas as pl
from jax.experimental.pallas import tpu as pltpu

B, C_IN, H, W = 2, 4, 16, 16
C_MID = 32
NUM_CLASSES = 10
KH = KW = 3

K_RAW = KH * KW * C_IN          # 36
K_PAD = 64                      # small, safe contraction pad (MXU pads to 128 internally)
N_PAD = 128                     # pad logits to a full lane width (lane-dense store)
HW = H * W

# Advisory cost estimate (conv matmul + pool matmul + head matmul).
_FLOPS = 2 * (B * HW * K_PAD * C_MID + B * (B * HW) * C_MID + B * C_MID * N_PAD)
_BYTES = (B * HW * K_PAD * 2 + K_PAD * C_MID * 2 + C_MID * 4
          + B * (B * HW) * 4 + C_MID * N_PAD * 2 + N_PAD * 4 + B * N_PAD * 4)


def _base_model_kernel(slab_ref, wconv_ref, bconv_ref, pool_ref, whead_ref, bhead_ref,
                       out_ref):
    """Fused conv(as one bf16 matmul) + f32 bias/ReLU + MXU global-avg-pool + bf16 head.

    slab_ref : (B*H*W, K_PAD)  bf16  im2col'd, zero-padded conv operand
    wconv_ref: (K_PAD, C_MID)  bf16  conv weight, (kh,kw,cin)->rows, zero-padded
    bconv_ref: (1, C_MID)      f32   conv bias
    pool_ref : (B, B*H*W)      f32   block-diagonal 1/(H*W) pooling matrix
    whead_ref: (C_MID, N_PAD)  bf16  head weight, zero-padded to 128 lanes
    bhead_ref: (1, N_PAD)      f32   head bias, zero-padded to 128 lanes
    out_ref  : (B, N_PAD)      f32   padded logits; wrapper slices [:, :NUM_CLASSES]
    """
    # Single bf16 MXU matmul, f32 accumulation.
    acc = jnp.dot(slab_ref[...], wconv_ref[...],
                  preferred_element_type=jnp.float32)            # (B*H*W, C_MID) f32
    feat = jnp.maximum(acc + bconv_ref[...], 0.0)                # bias + ReLU in f32
    # Global average pool on the MXU, kept f32 for the exact 1/(H*W) averaging.
    pooled = jnp.dot(pool_ref[...], feat,
                     preferred_element_type=jnp.float32)         # (B, C_MID) f32
    logits = jnp.dot(pooled.astype(jnp.bfloat16), whead_ref[...],
                     preferred_element_type=jnp.float32) + bhead_ref[...]
    out_ref[...] = logits.astype(out_ref.dtype)                  # (B, N_PAD) lane-dense


_pallas_forward = pl.pallas_call(
    _base_model_kernel,
    out_shape=jax.ShapeDtypeStruct((B, N_PAD), jnp.float32),
    grid_spec=pltpu.PrefetchScalarGridSpec(
        num_scalar_prefetch=0,
        grid=(1,),                                               # whole batch in one step
        in_specs=[
            pl.BlockSpec((B * HW, K_PAD), lambda i: (0, 0)),
            pl.BlockSpec((K_PAD, C_MID), lambda i: (0, 0)),
            pl.BlockSpec((1, C_MID), lambda i: (0, 0)),
            pl.BlockSpec((B, B * HW), lambda i: (0, 0)),
            pl.BlockSpec((C_MID, N_PAD), lambda i: (0, 0)),
            pl.BlockSpec((1, N_PAD), lambda i: (0, 0)),
        ],
        out_specs=pl.BlockSpec((B, N_PAD), lambda i: (0, 0)),
    ),
    compiler_params=pltpu.CompilerParams(
        dimension_semantics=("arbitrary",)),                     # B=2: one TC is optimal
    cost_estimate=pl.CostEstimate(
        flops=_FLOPS, transcendentals=0, bytes_accessed=_BYTES),
)


def prepare_transfer_params(params):
    """Build once per parameter set: padded/bf16 weights and the pooling matrix."""
    wconv, bconv, whead, bhead = params
    wconv2d = wconv.reshape(K_RAW, C_MID)                        # (36, C_MID), (kh,kw,cin) rows
    wconv2d = jnp.pad(wconv2d, ((0, K_PAD - K_RAW), (0, 0))).astype(jnp.bfloat16)
    whead_p = jnp.pad(whead, ((0, 0), (0, N_PAD - NUM_CLASSES))).astype(jnp.bfloat16)
    bhead_p = jnp.pad(bhead, ((0, 0), (0, N_PAD - NUM_CLASSES))).astype(jnp.float32)
    # Block-diagonal pooling matrix: row b has 1/(H*W) on columns [b*HW, (b+1)*HW).
    pool = jnp.repeat(jnp.eye(B, dtype=jnp.float32), HW, axis=1) / float(HW)
    return (wconv2d, bconv.astype(jnp.float32), pool, whead_p, bhead_p)


@jax.jit
def transfer_wrap_forward(x_nchw, prepped):
    """Equivalent of TransferWrap(base_model)(x): returns y_pred of shape (B, NUM_CLASSES)."""
    wconv2d, bconv, pool, whead_p, bhead_p = prepped

    # im2col -> lane-contiguous slab (fused by jit into the surrounding program).
    x = jnp.transpose(x_nchw, (0, 2, 3, 1))                      # NCHW -> NHWC
    xpad = jnp.pad(x, ((0, 0), (1, 1), (1, 1), (0, 0)))          # zero pad for SAME conv
    taps = [xpad[:, kh:kh + H, kw:kw + W, :]                     # 9 shifted views
            for kh in range(KH) for kw in range(KW)]
    patches = jnp.stack(taps, axis=3)                            # (B, H, W, 9, C_IN)
    slab = patches.reshape(B * HW, K_RAW)                        # (B*H*W, 36)
    slab = jnp.pad(slab, ((0, 0), (0, K_PAD - K_RAW))).astype(jnp.bfloat16)

    out = _pallas_forward(slab, wconv2d, bconv, pool, whead_p, bhead_p)
    return out[:, :NUM_CLASSES]                                  # (B, NUM_CLASSES)


def reference_forward(x_nchw, params):
    """Pure-JAX f32 reference of the synthetic base model (correctness check)."""
    wconv, bconv, whead, bhead = params
    x = jnp.transpose(x_nchw, (0, 2, 3, 1))
    y = jax.lax.conv_general_dilated(
        x, wconv, window_strides=(1, 1), padding="SAME",
        dimension_numbers=("NHWC", "HWIO", "NHWC"))
    y = jnp.maximum(y + bconv.reshape(1, 1, 1, C_MID), 0.0)
    pooled = jnp.mean(y, axis=(1, 2))                            # (B, C_MID)
    return pooled @ whead + bhead                                # (B, NUM_CLASSES)


def make_params():
    """Deterministic synthetic parameters (no checkpoint loading)."""
    key = jax.random.PRNGKey(0)
    k1, k2, k3 = jax.random.split(key, 3)
    wconv = 0.1 * jax.random.normal(k1, (KH, KW, C_IN, C_MID), dtype=jnp.float32)
    bconv = 0.05 * jnp.ones((1, C_MID), dtype=jnp.float32)
    whead = 0.1 * jax.random.normal(k2, (C_MID, NUM_CLASSES), dtype=jnp.float32)
    bhead = 0.01 * jax.random.normal(k3, (1, NUM_CLASSES), dtype=jnp.float32)
    return wconv, bconv, whead, bhead


if __name__ == "__main__":
    key = jax.random.PRNGKey(0)
    x = jax.random.normal(jax.random.fold_in(key, 7), (B, C_IN, H, W), dtype=jnp.float32)
    params = make_params()
    prepped = prepare_transfer_params(params)                    # hoisted, built once

    y_pred = transfer_wrap_forward(x, prepped)
    y_pred = jax.block_until_ready(y_pred)

    y_ref = reference_forward(x, params)
    assert y_pred.shape == (B, NUM_CLASSES)
    # bf16 MXU operands (with f32 accumulation) vs pure-f32 reference -> loosened tolerance.
    assert jnp.allclose(y_pred, y_ref, rtol=2e-2, atol=2e-2)

    print("KERNEL_OK")
</pallas_src>

<mosaic_0001>
module attributes {stable_mosaic.version = 11 : i64} {
  func.func @_base_model_kernel(%arg0: i32, %arg1: memref<512x64xbf16, #tpu.memory_space<vmem>>, %arg2: memref<64x32xbf16, #tpu.memory_space<vmem>>, %arg3: memref<1x32xf32, #tpu.memory_space<vmem>>, %arg4: memref<2x512xf32, #tpu.memory_space<vmem>>, %arg5: memref<32x128xbf16, #tpu.memory_space<vmem>>, %arg6: memref<1x128xf32, #tpu.memory_space<vmem>>, %arg7: memref<2x128xf32, #tpu.memory_space<vmem>>) attributes {dimension_semantics = [#tpu.dimension_semantics<arbitrary>], iteration_bounds = array<i64: 1>, scalar_prefetch = 0 : i64, scratch_operands = 0 : i64, tpu.core_type = #tpu.core_type<tc>, window_params = [{pipeline_mode = #tpu.pipeline_mode<synchronous>, transform_indices = @transform_0, window_bounds = array<i64: 512, 64>}, {pipeline_mode = #tpu.pipeline_mode<synchronous>, transform_indices = @transform_1, window_bounds = array<i64: 64, 32>}, {pipeline_mode = #tpu.pipeline_mode<synchronous>, transform_indices = @transform_2, window_bounds = array<i64: 1, 32>}, {pipeline_mode = #tpu.pipeline_mode<synchronous>, transform_indices = @transform_3, window_bounds = array<i64: 2, 512>}, {pipeline_mode = #tpu.pipeline_mode<synchronous>, transform_indices = @transform_4, window_bounds = array<i64: 32, 128>}, {pipeline_mode = #tpu.pipeline_mode<synchronous>, transform_indices = @transform_5, window_bounds = array<i64: 1, 128>}, {pipeline_mode = #tpu.pipeline_mode<synchronous>, transform_indices = @transform_6, window_bounds = array<i64: 2, 128>}]} {
    %c0 = arith.constant 0 : index
    %c0_0 = arith.constant 0 : index
    %0 = vector.load %arg1[%c0, %c0_0] : memref<512x64xbf16, #tpu.memory_space<vmem>>, vector<512x64xbf16>
    %c0_1 = arith.constant 0 : index
    %c0_2 = arith.constant 0 : index
    %1 = vector.load %arg2[%c0_1, %c0_2] : memref<64x32xbf16, #tpu.memory_space<vmem>>, vector<64x32xbf16>
    %cst = arith.constant dense<0.000000e+00> : vector<512x32xf32>
    %2 = tpu.matmul %0, %1, %cst {dimension_numbers = #tpu.dot_dimension_numbers<[1], [0], [0], [1], [0, 0, 1, 1], [], []>} : vector<512x64xbf16>, vector<64x32xbf16>, vector<512x32xf32> -> vector<512x32xf32>
    %c0_3 = arith.constant 0 : index
    %c0_4 = arith.constant 0 : index
    %3 = vector.load %arg3[%c0_3, %c0_4] : memref<1x32xf32, #tpu.memory_space<vmem>>, vector<1x32xf32>
    %4 = vector.broadcast %3 : vector<1x32xf32> to vector<512x32xf32>
    %5 = arith.addf %2, %4 : vector<512x32xf32>
    %cst_5 = arith.constant 0.000000e+00 : f32
    %6 = vector.broadcast %cst_5 : f32 to vector<512x32xf32>
    %7 = arith.maximumf %5, %6 : vector<512x32xf32>
    %c0_6 = arith.constant 0 : index
    %c0_7 = arith.constant 0 : index
    %8 = vector.load %arg4[%c0_6, %c0_7] : memref<2x512xf32, #tpu.memory_space<vmem>>, vector<2x512xf32>
    %cst_8 = arith.constant dense<0.000000e+00> : vector<2x32xf32>
    %9 = tpu.matmul %8, %7, %cst_8 {dimension_numbers = #tpu.dot_dimension_numbers<[1], [0], [0], [1], [0, 0, 1, 1], [], []>} : vector<2x512xf32>, vector<512x32xf32>, vector<2x32xf32> -> vector<2x32xf32>
    %10 = arith.truncf %9 : vector<2x32xf32> to vector<2x32xbf16>
    %c0_9 = arith.constant 0 : index
    %c0_10 = arith.constant 0 : index
    %11 = vector.load %arg5[%c0_9, %c0_10] : memref<32x128xbf16, #tpu.memory_space<vmem>>, vector<32x128xbf16>
    %cst_11 = arith.constant dense<0.000000e+00> : vector<2x128xf32>
    %12 = tpu.matmul %10, %11, %cst_11 {dimension_numbers = #tpu.dot_dimension_numbers<[1], [0], [0], [1], [0, 0, 1, 1], [], []>} : vector<2x32xbf16>, vector<32x128xbf16>, vector<2x128xf32> -> vector<2x128xf32>
    %c0_12 = arith.constant 0 : index
    %c0_13 = arith.constant 0 : index
    %13 = vector.load %arg6[%c0_12, %c0_13] : memref<1x128xf32, #tpu.memory_space<vmem>>, vector<1x128xf32>
    %14 = vector.broadcast %13 : vector<1x128xf32> to vector<2x128xf32>
    %15 = arith.addf %12, %14 : vector<2x128xf32>
    %c0_14 = arith.constant 0 : index
    %c0_15 = arith.constant 0 : index
    %16 = vector.load %arg7[%c0_14, %c0_15] : memref<2x128xf32, #tpu.memory_space<vmem>>, vector<2x128xf32>
    tpu.vector_store %arg7[%c0_14, %c0_15], %15 {strides = array<i32>} : memref<2x128xf32, #tpu.memory_space<vmem>>, vector<2x128xf32>,
    return
  }
  func.func @transform_0(%arg0: i32) -> (i32, i32) {
    %c0_i32 = arith.constant 0 : i32
    %c0_i32_0 = arith.constant 0 : i32
    %c0_i32_1 = arith.constant 0 : i32
    return %c0_i32, %c0_i32_0 : i32, i32
  }
  func.func @transform_1(%arg0: i32) -> (i32, i32) {
    %c0_i32 = arith.constant 0 : i32
    %c0_i32_0 = arith.constant 0 : i32
    %c0_i32_1 = arith.constant 0 : i32
    return %c0_i32, %c0_i32_0 : i32, i32
  }
  func.func @transform_2(%arg0: i32) -> (i32, i32) {
    %c0_i32 = arith.constant 0 : i32
    %c0_i32_0 = arith.constant 0 : i32
    %c0_i32_1 = arith.constant 0 : i32
    return %c0_i32, %c0_i32_0 : i32, i32
  }
  func.func @transform_3(%arg0: i32) -> (i32, i32) {
    %c0_i32 = arith.constant 0 : i32
    %c0_i32_0 = arith.constant 0 : i32
    %c0_i32_1 = arith.constant 0 : i32
    return %c0_i32, %c0_i32_0 : i32, i32
  }
  func.func @transform_4(%arg0: i32) -> (i32, i32) {
    %c0_i32 = arith.constant 0 : i32
    %c0_i32_0 = arith.constant 0 : i32
    %c0_i32_1 = arith.constant 0 : i32
    return %c0_i32, %c0_i32_0 : i32, i32
  }
  func.func @transform_5(%arg0: i32) -> (i32, i32) {
    %c0_i32 = arith.constant 0 : i32
    %c0_i32_0 = arith.constant 0 : i32
    %c0_i32_1 = arith.constant 0 : i32
    return %c0_i32, %c0_i32_0 : i32, i32
  }
  func.func @transform_6(%arg0: i32) -> (i32, i32) {
    %c0_i32 = arith.constant 0 : i32
    %c0_i32_0 = arith.constant 0 : i32
    %c0_i32_1 = arith.constant 0 : i32
    return %c0_i32, %c0_i32_0 : i32, i32
  }
}

</mosaic_0001>

<llo_original>
// kernel: transfer_wrap_forward.1
$region0: #{transfer_wrap_forward.1}
  #allocation0 [shape = 'u32[]', space=smem, size = 0x4, offset = 0x4, fixed_abs, tag = 'smem constant byte address 0x4 - core index']
  #allocation1 [shape = 'u32[72,128]{1,0:T(1,128)}', space=vmem, size = 0x9000, scoped, tag = 'internal scratch']
  %s0 = inlined_call_operand.vmem [shape: bf16[512,64], index: 0, kind: input, shape index: {}]
  %s1 = inlined_call_operand.vmem [shape: bf16[64,32], index: 1, kind: input, shape index: {}]
  %s2 = inlined_call_operand.vmem [shape: f32[1,32], index: 2, kind: input, shape index: {}]
  %s3 = inlined_call_operand.vmem [shape: f32[2,512], index: 3, kind: input, shape index: {}]
  %s4 = inlined_call_operand.vmem [shape: bf16[32,128], index: 4, kind: input, shape index: {}]
  %s5 = inlined_call_operand.vmem [shape: f32[1,128], index: 5, kind: input, shape index: {}]
  %s6 = inlined_call_operand.hbm [shape: f32[2,128], index: 6, kind: output, shape index: {}]
  %s7 = sld [smem:[#allocation0]]
  $region34: #{transfer_wrap_forward.1} parent=0
    _
  %s9 = ssub.s32 1, %s7
  %s10 = scalar_select 0, %s9, %s7
  $region1: #{transfer_wrap_forward.1} parent=0
    #allocation2 [shape = 'u8[1024]{0}', space=vmem, size = 0x400, scoped, tag = 'output window, operand 0, single buffered']
    #allocation3 [shape = 's32[1]{0}', space=sflag, size = 0x4, scoped, tag = 'scoped memory for transfer_wrap_forward.1']
    %11 = vsyncpa [#allocation3], 0
    // Predicated region
    $region2: #{transfer_wrap_forward.1} parent=1 // pred_check
      _
    $region3: #{transfer_wrap_forward.1} parent=1 // pred_check_branch
      %13 = sbr.rel (0) target = $region5
    $region4: #{transfer_wrap_forward.1} parent=1 // pred_region
      _
    $region5: #{transfer_wrap_forward.1} parent=1 // pred_fallthru
      _
    // Predicated region
    $region6: #{transfer_wrap_forward.1} parent=1 // pred_check
      _
    $region7: #{transfer_wrap_forward.1} parent=1 // pred_check_branch
      %15 = sbr.rel (0) target = $region9
    $region8: #{transfer_wrap_forward.1} parent=1 // pred_region
      _
    $region9: #{transfer_wrap_forward.1} parent=1 // pred_fallthru
      _
    // Predicated region
    $region10: #{transfer_wrap_forward.1} parent=1 // pred_check
      _
    $region11: #{transfer_wrap_forward.1} parent=1 // pred_check_branch
      %17 = sbr.rel (0) target = $region13
    $region12: #{transfer_wrap_forward.1} parent=1 // pred_region
      _
    $region13: #{transfer_wrap_forward.1} parent=1 // pred_fallthru
      _
    // Predicated region
    $region14: #{transfer_wrap_forward.1} parent=1 // pred_check
      _
    $region15: #{transfer_wrap_forward.1} parent=1 // pred_check_branch
      %19 = sbr.rel (0) target = $region17
    $region16: #{transfer_wrap_forward.1} parent=1 // pred_region
      _
    $region17: #{transfer_wrap_forward.1} parent=1 // pred_fallthru
      _
    // Predicated region
    $region18: #{transfer_wrap_forward.1} parent=1 // pred_check
      _
    $region19: #{transfer_wrap_forward.1} parent=1 // pred_check_branch
      %21 = sbr.rel (0) target = $region21
    $region20: #{transfer_wrap_forward.1} parent=1 // pred_region
      _
    $region21: #{transfer_wrap_forward.1} parent=1 // pred_fallthru
      _
    // Predicated region
    $region22: #{transfer_wrap_forward.1} parent=1 // pred_check
      _
    $region23: #{transfer_wrap_forward.1} parent=1 // pred_check_branch
      %23 = sbr.rel (0) target = $region25
    $region24: #{transfer_wrap_forward.1} parent=1 // pred_region
      _
    $region25: #{transfer_wrap_forward.1} parent=1 // pred_fallthru
      _
    %v25 = vld [vmem:[%s0] sm:$0xf]
    %v26 = vld [vmem:[%s0 + $0x4] sm:$0xf]
    %v27 = vld [vmem:[%s0 + $0x8] sm:$0xf]
    %v28 = vld [vmem:[%s0 + $0xc] sm:$0xf]
    %v29 = vld [vmem:[%s0 + $0x10] sm:$0xf]
    %v30 = vld [vmem:[%s0 + $0x14] sm:$0xf]
    %v31 = vld [vmem:[%s0 + $0x18] sm:$0xf]
    %v32 = vld [vmem:[%s0 + $0x1c] sm:$0xf]
    %v33 = vld [vmem:[%s0 + $0x20] sm:$0xf]
    %v34 = vld [vmem:[%s0 + $0x24] sm:$0xf]
    %v35 = vld [vmem:[%s0 + $0x28] sm:$0xf]
    %v36 = vld [vmem:[%s0 + $0x2c] sm:$0xf]
    %v37 = vld [vmem:[%s0 + $0x30] sm:$0xf]
    %v38 = vld [vmem:[%s0 + $0x34] sm:$0xf]
    %v39 = vld [vmem:[%s0 + $0x38] sm:$0xf]
    %v40 = vld [vmem:[%s0 + $0x3c] sm:$0xf]
    %v41 = vld [vmem:[%s0 + $0x40] sm:$0xf]
    %v42 = vld [vmem:[%s0 + $0x44] sm:$0xf]
    %v43 = vld [vmem:[%s0 + $0x48] sm:$0xf]
    %v44 = vld [vmem:[%s0 + $0x4c] sm:$0xf]
    %v45 = vld [vmem:[%s0 + $0x50] sm:$0xf]
    %v46 = vld [vmem:[%s0 + $0x54] sm:$0xf]
    %v47 = vld [vmem:[%s0 + $0x58] sm:$0xf]
    %v48 = vld [vmem:[%s0 + $0x5c] sm:$0xf]
    %v49 = vld [vmem:[%s0 + $0x60] sm:$0xf]
    %v50 = vld [vmem:[%s0 + $0x64] sm:$0xf]
    %v51 = vld [vmem:[%s0 + $0x68] sm:$0xf]
    %v52 = vld [vmem:[%s0 + $0x6c] sm:$0xf]
    %v53 = vld [vmem:[%s0 + $0x70] sm:$0xf]
    %v54 = vld [vmem:[%s0 + $0x74] sm:$0xf]
    %v55 = vld [vmem:[%s0 + $0x78] sm:$0xf]
    %v56 = vld [vmem:[%s0 + $0x7c] sm:$0xf]
    %v57 = vld [vmem:[%s0 + $0x80] sm:$0xf]
    %v58 = vld [vmem:[%s0 + $0x84] sm:$0xf]
    %v59 = vld [vmem:[%s0 + $0x88] sm:$0xf]
    %v60 = vld [vmem:[%s0 + $0x8c] sm:$0xf]
    %v61 = vld [vmem:[%s0 + $0x90] sm:$0xf]
    %v62 = vld [vmem:[%s0 + $0x94] sm:$0xf]
    %v63 = vld [vmem:[%s0 + $0x98] sm:$0xf]
    %v64 = vld [vmem:[%s0 + $0x9c] sm:$0xf]
    %v65 = vld [vmem:[%s0 + $0xa0] sm:$0xf]
    %v66 = vld [vmem:[%s0 + $0xa4] sm:$0xf]
    %v67 = vld [vmem:[%s0 + $0xa8] sm:$0xf]
    %v68 = vld [vmem:[%s0 + $0xac] sm:$0xf]
    %v69 = vld [vmem:[%s0 + $0xb0] sm:$0xf]
    %v70 = vld [vmem:[%s0 + $0xb4] sm:$0xf]
    %v71 = vld [vmem:[%s0 + $0xb8] sm:$0xf]
    %v72 = vld [vmem:[%s0 + $0xbc] sm:$0xf]
    %v73 = vld [vmem:[%s0 + $0xc0] sm:$0xf]
    %v74 = vld [vmem:[%s0 + $0xc4] sm:$0xf]
    %v75 = vld [vmem:[%s0 + $0xc8] sm:$0xf]
    %v76 = vld [vmem:[%s0 + $0xcc] sm:$0xf]
    %v77 = vld [vmem:[%s0 + $0xd0] sm:$0xf]
    %v78 = vld [vmem:[%s0 + $0xd4] sm:$0xf]
    %v79 = vld [vmem:[%s0 + $0xd8] sm:$0xf]
    %v80 = vld [vmem:[%s0 + $0xdc] sm:$0xf]
    %v81 = vld [vmem:[%s0 + $0xe0] sm:$0xf]
    %v82 = vld [vmem:[%s0 + $0xe4] sm:$0xf]
    %v83 = vld [vmem:[%s0 + $0xe8] sm:$0xf]
    %v84 = vld [vmem:[%s0 + $0xec] sm:$0xf]
    %v85 = vld [vmem:[%s0 + $0xf0] sm:$0xf]
    %v86 = vld [vmem:[%s0 + $0xf4] sm:$0xf]
    %v87 = vld [vmem:[%s0 + $0xf8] sm:$0xf]
    %v88 = vld [vmem:[%s0 + $0xfc] sm:$0xf]
    %v89 = vld [vmem:[%s1] sm:$0xf]
    %v90 = vld [vmem:[%s1 + $0x4] sm:$0xf]
    %v91 = vld [vmem:[%s1 + $0x8] sm:$0xf]
    %v92 = vld [vmem:[%s1 + $0xc] sm:$0xf]
    %v93 = vld [vmem:[%s1 + $0x10] sm:$0xf]
    %v94 = vld [vmem:[%s1 + $0x14] sm:$0xf]
    %v95 = vld [vmem:[%s1 + $0x18] sm:$0xf]
    %v96 = vld [vmem:[%s1 + $0x1c] sm:$0xf]
    %v97 = vld [vmem:[%s2] sm:$0x1]
    %v99 = vperm.slane %v97, 0
    %v165 = vunpack.c.l.b16 %v25
    %v166 = vunpack.c.l.b16 %v26
    %v167 = vunpack.c.l.b16 %v27
    %v168 = vunpack.c.l.b16 %v28
    %v169 = vunpack.c.l.b16 %v29
    %v170 = vunpack.c.l.b16 %v30
    %v171 = vunpack.c.l.b16 %v31
    %v172 = vunpack.c.l.b16 %v32
    %v173 = vunpack.c.l.b16 %v33
    %v174 = vunpack.c.l.b16 %v34
    %v175 = vunpack.c.l.b16 %v35
    %v176 = vunpack.c.l.b16 %v36
    %v177 = vunpack.c.l.b16 %v37
    %v178 = vunpack.c.l.b16 %v38
    %v179 = vunpack.c.l.b16 %v39
    %v180 = vunpack.c.l.b16 %v40
    %v181 = vunpack.c.l.b16 %v41
    %v182 = vunpack.c.l.b16 %v42
    %v183 = vunpack.c.l.b16 %v43
    %v184 = vunpack.c.l.b16 %v44
    %v185 = vunpack.c.l.b16 %v45
    %v186 = vunpack.c.l.b16 %v46
    %v187 = vunpack.c.l.b16 %v47
    %v188 = vunpack.c.l.b16 %v48
    %v189 = vunpack.c.l.b16 %v49
    %v190 = vunpack.c.l.b16 %v50
    %v191 = vunpack.c.l.b16 %v51
    %v192 = vunpack.c.l.b16 %v52
    %v193 = vunpack.c.l.b16 %v53
    %v194 = vunpack.c.l.b16 %v54
    %v195 = vunpack.c.l.b16 %v55
    %v196 = vunpack.c.l.b16 %v56
    %v197 = vunpack.c.l.b16 %v57
    %v198 = vunpack.c.l.b16 %v58
    %v199 = vunpack.c.l.b16 %v59
    %v200 = vunpack.c.l.b16 %v60
    %v201 = vunpack.c.l.b16 %v61
    %v202 = vunpack.c.l.b16 %v62
    %v203 = vunpack.c.l.b16 %v63
    %v204 = vunpack.c.l.b16 %v64
    %v205 = vunpack.c.l.b16 %v65
    %v206 = vunpack.c.l.b16 %v66
    %v207 = vunpack.c.l.b16 %v67
    %v208 = vunpack.c.l.b16 %v68
    %v209 = vunpack.c.l.b16 %v69
    %v210 = vunpack.c.l.b16 %v70
    %v211 = vunpack.c.l.b16 %v71
    %v212 = vunpack.c.l.b16 %v72
    %v213 = vunpack.c.l.b16 %v73
    %v214 = vunpack.c.l.b16 %v74
    %v215 = vunpack.c.l.b16 %v75
    %v216 = vunpack.c.l.b16 %v76
    %v217 = vunpack.c.l.b16 %v77
    %v218 = vunpack.c.l.b16 %v78
    %v219 = vunpack.c.l.b16 %v79
    %v220 = vunpack.c.l.b16 %v80
    %v221 = vunpack.c.l.b16 %v81
    %v222 = vunpack.c.l.b16 %v82
    %v223 = vunpack.c.l.b16 %v83
    %v224 = vunpack.c.l.b16 %v84
    %v225 = vunpack.c.l.b16 %v85
    %v226 = vunpack.c.l.b16 %v86
    %v227 = vunpack.c.l.b16 %v87
    %v228 = vunpack.c.l.b16 %v88
    %v229 = vpack.c.b16 %v166, %v165
    %v230 = vpack.c.b16 %v168, %v167
    %v231 = vpack.c.b16 %v170, %v169
    %v232 = vpack.c.b16 %v172, %v171
    %v233 = vpack.c.b16 %v174, %v173
    %v234 = vpack.c.b16 %v176, %v175
    %v235 = vpack.c.b16 %v178, %v177
    %v236 = vpack.c.b16 %v180, %v179
    %v237 = vpack.c.b16 %v182, %v181
    %v238 = vpack.c.b16 %v184, %v183
    %v239 = vpack.c.b16 %v186, %v185
    %v240 = vpack.c.b16 %v188, %v187
    %v241 = vpack.c.b16 %v190, %v189
    %v242 = vpack.c.b16 %v192, %v191
    %v243 = vpack.c.b16 %v194, %v193
    %v244 = vpack.c.b16 %v196, %v195
    %v245 = vpack.c.b16 %v198, %v197
    %v246 = vpack.c.b16 %v200, %v199
    %v247 = vpack.c.b16 %v202, %v201
    %v248 = vpack.c.b16 %v204, %v203
    %v249 = vpack.c.b16 %v206, %v205
    %v250 = vpack.c.b16 %v208, %v207
    %v251 = vpack.c.b16 %v210, %v209
    %v252 = vpack.c.b16 %v212, %v211
    %v253 = vpack.c.b16 %v214, %v213
    %v254 = vpack.c.b16 %v216, %v215
    %v255 = vpack.c.b16 %v218, %v217
    %v256 = vpack.c.b16 %v220, %v219
    %v257 = vpack.c.b16 %v222, %v221
    %v258 = vpack.c.b16 %v224, %v223
    %v259 = vpack.c.b16 %v226, %v225
    %v260 = vpack.c.b16 %v228, %v227
    %v269 = vunpack.c.l.b16 %v89
    %v270 = vunpack.c.l.b16 %v90
    %v271 = vunpack.c.l.b16 %v91
    %v272 = vunpack.c.l.b16 %v92
    %v273 = vunpack.c.l.b16 %v93
    %v274 = vunpack.c.l.b16 %v94
    %v275 = vunpack.c.l.b16 %v95
    %v276 = vunpack.c.l.b16 %v96
    %v277 = vpack.c.b16 %v270, %v269
    %v278 = vpack.c.b16 %v272, %v271
    %v279 = vpack.c.b16 %v274, %v273
    %v280 = vpack.c.b16 %v276, %v275
    %vm285 = vcmask 523264
    %v287 = vsel %vm285, %v229, 0
    %v290 = vsel %vm285, %v230, 0
    %v293 = vsel %vm285, %v231, 0
    %v296 = vsel %vm285, %v232, 0
    %v299 = vsel %vm285, %v233, 0
    %v302 = vsel %vm285, %v234, 0
    %v305 = vsel %vm285, %v235, 0
    %v308 = vsel %vm285, %v236, 0
    %v311 = vsel %vm285, %v237, 0
    %v314 = vsel %vm285, %v238, 0
    %v317 = vsel %vm285, %v239, 0
    %v320 = vsel %vm285, %v240, 0
    %v323 = vsel %vm285, %v241, 0
    %v326 = vsel %vm285, %v242, 0
    %v329 = vsel %vm285, %v243, 0
    %v332 = vsel %vm285, %v244, 0
    %v335 = vsel %vm285, %v245, 0
    %v338 = vsel %vm285, %v246, 0
    %v341 = vsel %vm285, %v247, 0
    %v344 = vsel %vm285, %v248, 0
    %v347 = vsel %vm285, %v249, 0
    %v350 = vsel %vm285, %v250, 0
    %v353 = vsel %vm285, %v251, 0
    %v356 = vsel %vm285, %v252, 0
    %v359 = vsel %vm285, %v253, 0
    %v362 = vsel %vm285, %v254, 0
    %v365 = vsel %vm285, %v255, 0
    %v368 = vsel %vm285, %v256, 0
    %v371 = vsel %vm285, %v257, 0
    %v374 = vsel %vm285, %v258, 0
    %v377 = vsel %vm285, %v259, 0
    %v380 = vsel %vm285, %v260, 0
    %382 = vmatpush.bf16.msra.mxu0 0
    %383 = vmatpush.bf16.msra.mxu0 0
    %384 = vmatpush.bf16.msra.mxu0 0
    %385 = vmatpush.bf16.msra.mxu0 0
    %386 = vmatpush.bf16.msra.mxu0 %v280
    %387 = vmatpush.bf16.msra.mxu0 %v279
    %388 = vmatpush.bf16.msra.mxu0 %v278
    %389 = vmatpush.bf16.msra.mxu0 %v277
    %390 = vmatmul.bf16.gmra.mxu0 %v287
    %v391 = vpop.f32.mrf.mxu0
    %v392 = vadd.f32 %v99, %v391
    %v393 = vpop.f32.mrf.mxu0
    %v394 = vadd.f32 %v99, %v393
    %395 = vmatmul.bf16.gmra.mxu0 %v290
    %v396 = vpop.f32.mrf.mxu0
    %v397 = vadd.f32 %v99, %v396
    %v398 = vpop.f32.mrf.mxu0
    %v399 = vadd.f32 %v99, %v398
    %400 = vmatmul.bf16.gmra.mxu0 %v293
    %v401 = vpop.f32.mrf.mxu0
    %v402 = vadd.f32 %v99, %v401
    %v403 = vpop.f32.mrf.mxu0
    %v404 = vadd.f32 %v99, %v403
    %405 = vmatmul.bf16.gmra.mxu0 %v296
    %v406 = vpop.f32.mrf.mxu0
    %v407 = vadd.f32 %v99, %v406
    %v408 = vpop.f32.mrf.mxu0
    %v409 = vadd.f32 %v99, %v408
    %410 = vmatmul.bf16.gmra.mxu0 %v299
    %v411 = vpop.f32.mrf.mxu0
    %v412 = vadd.f32 %v99, %v411
    %v413 = vpop.f32.mrf.mxu0
    %v414 = vadd.f32 %v99, %v413
    %415 = vmatmul.bf16.gmra.mxu0 %v302
    %v416 = vpop.f32.mrf.mxu0
    %v417 = vadd.f32 %v99, %v416
    %v418 = vpop.f32.mrf.mxu0
    %v419 = vadd.f32 %v99, %v418
    %420 = vmatmul.bf16.gmra.mxu0 %v305
    %v421 = vpop.f32.mrf.mxu0
    %v422 = vadd.f32 %v99, %v421
    %v423 = vpop.f32.mrf.mxu0
    %v424 = vadd.f32 %v99, %v423
    %425 = vmatmul.bf16.gmra.mxu0 %v308
    %v426 = vpop.f32.mrf.mxu0
    %v427 = vadd.f32 %v99, %v426
    %v428 = vpop.f32.mrf.mxu0
    %v429 = vadd.f32 %v99, %v428
    %430 = vmatmul.bf16.gmra.mxu0 %v311
    %v431 = vpop.f32.mrf.mxu0
    %v432 = vadd.f32 %v99, %v431
    %v433 = vpop.f32.mrf.mxu0
    %v434 = vadd.f32 %v99, %v433
    %435 = vmatmul.bf16.gmra.mxu0 %v314
    %v436 = vpop.f32.mrf.mxu0
    %v437 = vadd.f32 %v99, %v436
    %v438 = vpop.f32.mrf.mxu0
    %v439 = vadd.f32 %v99, %v438
    %440 = vmatmul.bf16.gmra.mxu0 %v317
    %v441 = vpop.f32.mrf.mxu0
    %v442 = vadd.f32 %v99, %v441
    %v443 = vpop.f32.mrf.mxu0
    %v444 = vadd.f32 %v99, %v443
    %445 = vmatmul.bf16.gmra.mxu0 %v320
    %v446 = vpop.f32.mrf.mxu0
    %v447 = vadd.f32 %v99, %v446
    %v448 = vpop.f32.mrf.mxu0
    %v449 = vadd.f32 %v99, %v448
    %450 = vmatmul.bf16.gmra.mxu0 %v323
    %v451 = vpop.f32.mrf.mxu0
    %v452 = vadd.f32 %v99, %v451
    %v453 = vpop.f32.mrf.mxu0
    %v454 = vadd.f32 %v99, %v453
    %455 = vmatmul.bf16.gmra.mxu0 %v326
    %v456 = vpop.f32.mrf.mxu0
    %v457 = vadd.f32 %v99, %v456
    %v458 = vpop.f32.mrf.mxu0
    %v459 = vadd.f32 %v99, %v458
    %460 = vmatmul.bf16.gmra.mxu0 %v329
    %v461 = vpop.f32.mrf.mxu0
    %v462 = vadd.f32 %v99, %v461
    %v463 = vpop.f32.mrf.mxu0
    %v464 = vadd.f32 %v99, %v463
    %465 = vmatmul.bf16.gmra.mxu0 %v332
    %v466 = vpop.f32.mrf.mxu0
    %v467 = vadd.f32 %v99, %v466
    %v468 = vpop.f32.mrf.mxu0
    %v469 = vadd.f32 %v99, %v468
    %470 = vmatmul.bf16.gmra.mxu0 %v335
    %v471 = vpop.f32.mrf.mxu0
    %v472 = vadd.f32 %v99, %v471
    %v473 = vpop.f32.mrf.mxu0
    %v474 = vadd.f32 %v99, %v473
    %475 = vmatmul.bf16.gmra.mxu0 %v338
    %v476 = vpop.f32.mrf.mxu0
    %v477 = vadd.f32 %v99, %v476
    %v478 = vpop.f32.mrf.mxu0
    %v479 = vadd.f32 %v99, %v478
    %480 = vmatmul.bf16.gmra.mxu0 %v341
    %v481 = vpop.f32.mrf.mxu0
    %v482 = vadd.f32 %v99, %v481
    %v483 = vpop.f32.mrf.mxu0
    %v484 = vadd.f32 %v99, %v483
    %485 = vmatmul.bf16.gmra.mxu0 %v344
    %v486 = vpop.f32.mrf.mxu0
    %v487 = vadd.f32 %v99, %v486
    %v488 = vpop.f32.mrf.mxu0
    %v489 = vadd.f32 %v99, %v488
    %490 = vmatmul.bf16.gmra.mxu0 %v347
    %v491 = vpop.f32.mrf.mxu0
    %v492 = vadd.f32 %v99, %v491
    %v493 = vpop.f32.mrf.mxu0
    %v494 = vadd.f32 %v99, %v493
    %495 = vmatmul.bf16.gmra.mxu0 %v350
    %v496 = vpop.f32.mrf.mxu0
    %v497 = vadd.f32 %v99, %v496
    %v498 = vpop.f32.mrf.mxu0
    %v499 = vadd.f32 %v99, %v498
    %500 = vmatmul.bf16.gmra.mxu0 %v353
    %v501 = vpop.f32.mrf.mxu0
    %v502 = vadd.f32 %v99, %v501
    %v503 = vpop.f32.mrf.mxu0
    %v504 = vadd.f32 %v99, %v503
    %505 = vmatmul.bf16.gmra.mxu0 %v356
    %v506 = vpop.f32.mrf.mxu0
    %v507 = vadd.f32 %v99, %v506
    %v508 = vpop.f32.mrf.mxu0
    %v509 = vadd.f32 %v99, %v508
    %510 = vmatmul.bf16.gmra.mxu0 %v359
    %v511 = vpop.f32.mrf.mxu0
    %v512 = vadd.f32 %v99, %v511
    %v513 = vpop.f32.mrf.mxu0
    %v514 = vadd.f32 %v99, %v513
    %515 = vmatmul.bf16.gmra.mxu0 %v362
    %v516 = vpop.f32.mrf.mxu0
    %v517 = vadd.f32 %v99, %v516
    %v518 = vpop.f32.mrf.mxu0
    %v519 = vadd.f32 %v99, %v518
    %520 = vmatmul.bf16.gmra.mxu0 %v365
    %v521 = vpop.f32.mrf.mxu0
    %v522 = vadd.f32 %v99, %v521
    %v523 = vpop.f32.mrf.mxu0
    %v524 = vadd.f32 %v99, %v523
    %525 = vmatmul.bf16.gmra.mxu0 %v368
    %v526 = vpop.f32.mrf.mxu0
    %v527 = vadd.f32 %v99, %v526
    %v528 = vpop.f32.mrf.mxu0
    %v529 = vadd.f32 %v99, %v528
    %530 = vmatmul.bf16.gmra.mxu0 %v371
    %v531 = vpop.f32.mrf.mxu0
    %v532 = vadd.f32 %v99, %v531
    %v533 = vpop.f32.mrf.mxu0
    %v534 = vadd.f32 %v99, %v533
    %535 = vmatmul.bf16.gmra.mxu0 %v374
    %v536 = vpop.f32.mrf.mxu0
    %v537 = vadd.f32 %v99, %v536
    %v538 = vpop.f32.mrf.mxu0
    %v539 = vadd.f32 %v99, %v538
    %540 = vmatmul.bf16.gmra.mxu0 %v377
    %v541 = vpop.f32.mrf.mxu0
    %v542 = vadd.f32 %v99, %v541
    %v543 = vpop.f32.mrf.mxu0
    %v544 = vadd.f32 %v99, %v543
    %545 = vmatmul.bf16.gmra.mxu0 %v380
    %v546 = vpop.f32.mrf.mxu0
    %v547 = vadd.f32 %v99, %v546
    %v548 = vpop.f32.mrf.mxu0
    %v549 = vadd.f32 %v99, %v548
    %550 = vdwg.mxu0
    %v551 = vmax.f32 %v392, 0.0
    %v552 = vmax.f32 %v394, 0.0
    %v553 = vmax.f32 %v397, 0.0
    %v554 = vmax.f32 %v399, 0.0
    %v555 = vmax.f32 %v402, 0.0
    %v556 = vmax.f32 %v404, 0.0
    %v557 = vmax.f32 %v407, 0.0
    %v558 = vmax.f32 %v409, 0.0
    %v559 = vmax.f32 %v412, 0.0
    %v560 = vmax.f32 %v414, 0.0
    %v561 = vmax.f32 %v417, 0.0
    %v562 = vmax.f32 %v419, 0.0
    %v563 = vmax.f32 %v422, 0.0
    %v564 = vmax.f32 %v424, 0.0
    %v565 = vmax.f32 %v427, 0.0
    %v566 = vmax.f32 %v429, 0.0
    %v567 = vmax.f32 %v432, 0.0
    %v568 = vmax.f32 %v434, 0.0
    %v569 = vmax.f32 %v437, 0.0
    %v570 = vmax.f32 %v439, 0.0
    %v571 = vmax.f32 %v442, 0.0
    %v572 = vmax.f32 %v444, 0.0
    %v573 = vmax.f32 %v447, 0.0
    %v574 = vmax.f32 %v449, 0.0
    %v575 = vmax.f32 %v452, 0.0
    %v576 = vmax.f32 %v454, 0.0
    %v577 = vmax.f32 %v457, 0.0
    %v578 = vmax.f32 %v459, 0.0
    %v579 = vmax.f32 %v462, 0.0
    %v580 = vmax.f32 %v464, 0.0
    %v581 = vmax.f32 %v467, 0.0
    %v582 = vmax.f32 %v469, 0.0
    %v583 = vmax.f32 %v472, 0.0
    %v584 = vmax.f32 %v474, 0.0
    %v585 = vmax.f32 %v477, 0.0
    %v586 = vmax.f32 %v479, 0.0
    %v587 = vmax.f32 %v482, 0.0
    %v588 = vmax.f32 %v484, 0.0
    %v589 = vmax.f32 %v487, 0.0
    %v590 = vmax.f32 %v489, 0.0
    %v591 = vmax.f32 %v492, 0.0
    %v592 = vmax.f32 %v494, 0.0
    %v593 = vmax.f32 %v497, 0.0
    %v594 = vmax.f32 %v499, 0.0
    %v595 = vmax.f32 %v502, 0.0
    %v596 = vmax.f32 %v504, 0.0
    %v597 = vmax.f32 %v507, 0.0
    %v598 = vmax.f32 %v509, 0.0
    %v599 = vmax.f32 %v512, 0.0
    %v600 = vmax.f32 %v514, 0.0
    %v601 = vmax.f32 %v517, 0.0
    %v602 = vmax.f32 %v519, 0.0
    %v603 = vmax.f32 %v522, 0.0
    %v604 = vmax.f32 %v524, 0.0
    %v605 = vmax.f32 %v527, 0.0
    %v606 = vmax.f32 %v529, 0.0
    %v607 = vmax.f32 %v532, 0.0
    %v608 = vmax.f32 %v534, 0.0
    %v609 = vmax.f32 %v537, 0.0
    %v610 = vmax.f32 %v539, 0.0
    %v611 = vmax.f32 %v542, 0.0
    %v612 = vmax.f32 %v544, 0.0
    %v613 = vmax.f32 %v547, 0.0
    %v614 = vmax.f32 %v549, 0.0
    %v615 = vld [vmem:[%s3] sm:$0xff]
    %617 = vst [vmem:[#allocation1] ss:$4 sm:$0xff] %v615
    %v618 = vld.sshfl [vmem:[#allocation1] sm:$0xff pattern:$0x73625140]
    %v619 = vld.sshfl [vmem:[#allocation1 + $0x8] sm:$0xff pattern:$0x73625140]
    %v620 = vld.sshfl [vmem:[#allocation1 + $0x10] sm:$0xff pattern:$0x73625140]
    %v621 = vld.sshfl [vmem:[#allocation1 + $0x18] sm:$0xff pattern:$0x73625140]
    %626 = vmatpush.msra.mxu0 %v566
    %627 = vmatpush.msra.mxu0 %v565
    %628 = vmatpush.msra.mxu0 %v564
    %629 = vmatpush.msra.mxu0 %v563
    %630 = vmatpush.msra.mxu0 %v562
    %631 = vmatpush.msra.mxu0 %v561
    %632 = vmatpush.msra.mxu0 %v560
    %633 = vmatpush.msra.mxu0 %v559
    %634 = vmatpush.msra.mxu0 %v558
    %635 = vmatpush.msra.mxu0 %v557
    %636 = vmatpush.msra.mxu0 %v556
    %637 = vmatpush.msra.mxu0 %v555
    %638 = vmatpush.msra.mxu0 %v554
    %639 = vmatpush.msra.mxu0 %v553
    %640 = vmatpush.msra.mxu0 %v552
    %641 = vmatpush.msra.mxu0 %v551
    %642 = vmatmul.f32.gmra.mxu0 %v618
    %v643 = vpop.f32.mrf.mxu0
    %v644 = vadd.f32 0.0, %v643
    %645 = vdwg.mxu0
    %646 = vmatpush.msra.mxu0 %v582
    %647 = vmatpush.msra.mxu0 %v581
    %648 = vmatpush.msra.mxu0 %v580
    %649 = vmatpush.msra.mxu0 %v579
    %650 = vmatpush.msra.mxu0 %v578
    %651 = vmatpush.msra.mxu0 %v577
    %652 = vmatpush.msra.mxu0 %v576
    %653 = vmatpush.msra.mxu0 %v575
    %654 = vmatpush.msra.mxu0 %v574
    %655 = vmatpush.msra.mxu0 %v573
    %656 = vmatpush.msra.mxu0 %v572
    %657 = vmatpush.msra.mxu0 %v571
    %658 = vmatpush.msra.mxu0 %v570
    %659 = vmatpush.msra.mxu0 %v569
    %660 = vmatpush.msra.mxu0 %v568
    %661 = vmatpush.msra.mxu0 %v567
    %662 = vmatmul.f32.gmra.mxu0 %v619
    %v663 = vpop.f32.mrf.mxu0
    %v664 = vadd.f32 %v644, %v663
    %665 = vdwg.mxu0
    %666 = vmatpush.msra.mxu0 %v598
    %667 = vmatpush.msra.mxu0 %v597
    %668 = vmatpush.msra.mxu0 %v596
    %669 = vmatpush.msra.mxu0 %v595
    %670 = vmatpush.msra.mxu0 %v594
    %671 = vmatpush.msra.mxu0 %v593
    %672 = vmatpush.msra.mxu0 %v592
    %673 = vmatpush.msra.mxu0 %v591
    %674 = vmatpush.msra.mxu0 %v590
    %675 = vmatpush.msra.mxu0 %v589
    %676 = vmatpush.msra.mxu0 %v588
    %677 = vmatpush.msra.mxu0 %v587
    %678 = vmatpush.msra.mxu0 %v586
    %679 = vmatpush.msra.mxu0 %v585
    %680 = vmatpush.msra.mxu0 %v584
    %681 = vmatpush.msra.mxu0 %v583
    %682 = vmatmul.f32.gmra.mxu0 %v620
    %v683 = vpop.f32.mrf.mxu0
    %v684 = vadd.f32 %v664, %v683
    %685 = vdwg.mxu0
    %686 = vmatpush.msra.mxu0 %v614
    %687 = vmatpush.msra.mxu0 %v613
    %688 = vmatpush.msra.mxu0 %v612
    %689 = vmatpush.msra.mxu0 %v611
    %690 = vmatpush.msra.mxu0 %v610
    %691 = vmatpush.msra.mxu0 %v609
    %692 = vmatpush.msra.mxu0 %v608
    %693 = vmatpush.msra.mxu0 %v607
    %694 = vmatpush.msra.mxu0 %v606
    %695 = vmatpush.msra.mxu0 %v605
    %696 = vmatpush.msra.mxu0 %v604
    %697 = vmatpush.msra.mxu0 %v603
    %698 = vmatpush.msra.mxu0 %v602
    %699 = vmatpush.msra.mxu0 %v601
    %700 = vmatpush.msra.mxu0 %v600
    %701 = vmatpush.msra.mxu0 %v599
    %702 = vmatmul.f32.gmra.mxu0 %v621
    %v703 = vpop.f32.mrf.mxu0
    %v704 = vadd.f32 %v684, %v703
    %705 = vdwg.mxu0
    %v706 = vpack.c.bf16 %v704, %v704
    %v707 = vld [vmem:[%s4] sm:$0xf]
    %v708 = vld [vmem:[%s4 + $0x4] sm:$0xf]
    %v709 = vld [vmem:[%s4 + $0x8] sm:$0xf]
    %v710 = vld [vmem:[%s4 + $0xc] sm:$0xf]
    %v711 = vld [vmem:[%s5] sm:$0x1]
    %v713 = vperm.slane %v711, 0
    %v719 = vunpack.c.l.b16 %v707
    %v720 = vunpack.c.l.b16 %v708
    %v721 = vunpack.c.l.b16 %v709
    %v722 = vunpack.c.l.b16 %v710
    %v723 = vpack.c.b16 %v720, %v719
    %v724 = vpack.c.b16 %v722, %v721
    %vm727 = vcmask 261120
    %v729 = vsel %vm727, %v706, 0
    %731 = vmatpush.bf16.msra.mxu0 0
    %732 = vmatpush.bf16.msra.mxu0 0
    %733 = vmatpush.bf16.msra.mxu0 0
    %734 = vmatpush.bf16.msra.mxu0 0
    %735 = vmatpush.bf16.msra.mxu0 0
    %736 = vmatpush.bf16.msra.mxu0 0
    %737 = vmatpush.bf16.msra.mxu0 %v724
    %738 = vmatpush.bf16.msra.mxu0 %v723
    %739 = vmatmul.bf16.gmra.mxu0 %v729
    %v740 = vpop.f32.mrf.mxu0
    %v741 = vadd.f32 %v713, %v740
    %v742 = vpop.f32.mrf.mxu0
    %743 = vdwg.mxu0
    %744 = vst [vmem:[#allocation2] sm:$0x3] %v741
    // Predicated region
    $region26: #{transfer_wrap_forward.1} parent=1 // pred_check
      _
    $region27: #{transfer_wrap_forward.1} parent=1 // pred_check_branch
      %746 = sbr.rel (0) target = $region29
    $region28: #{transfer_wrap_forward.1} parent=1 // pred_region
      %748 = vsyncadd [#allocation3], 0
      %s750 = sshll.u32 [#allocation2], 4
      %s751 = int_to_ptr.vmem [resolvable:$true] %s750
      %s752 = sshll.u32 %s6, 4
      %s753 = int_to_ptr.hbm [resolvable:$true] %s752
      %755 = dma.vmem_to_hbm [thread:$0]  %s751, 32, %s753, [#allocation3]
    $region29: #{transfer_wrap_forward.1} parent=1 // pred_fallthru
      _
    // Predicated region
    $region30: #{transfer_wrap_forward.1} parent=1 // pred_check
      _
    $region31: #{transfer_wrap_forward.1} parent=1 // pred_check_branch
      %757 = sbr.rel (0) target = $region33
    $region32: #{transfer_wrap_forward.1} parent=1 // pred_region
      %759 = dma.done [#allocation3], 32
    $region33: #{transfer_wrap_forward.1} parent=1 // pred_fallthru
      _
    %760 = vsyncpa [#allocation3], 1

</llo_original>
